<compile_context>
chip_gen: v7x
topology: tpu7x:2x2x1
jax: 0.10.0
libtpu: 0.0.40
codegen_flags: <defaults>
</compile_context>

<pallas_src>
import functools
import math

import jax
import jax.numpy as jnp
from jax.experimental import pallas as pl
from jax.experimental.pallas import tpu as pltpu


_LANES = 512                      # lane-dense slab width (multiple of 128)
_TILE_BYTES = 4 * 1024 * 1024     # per-operand, per-buffer VMEM tile budget
_VMEM_LIMIT = 48 * 1024 * 1024    # scoped VMEM: safe on v5e/v6e (128 MiB) and v7x (64 MiB)


def _round_up(x, m):
    return ((x + m - 1) // m) * m


def _sublane_min(dtype):
    # Native sublane packing: 8 rows for 32-bit, 16 for 16-bit, 32 for 8-bit.
    return max(8, 32 // jnp.dtype(dtype).itemsize)


def _pick_block_rows(rows, row_bytes, sublane, tile_bytes, min_grid=4):
    """Rows per block: ~tile_bytes per buffer, but keep >= min_grid grid steps."""
    br = max(sublane, (tile_bytes // max(row_bytes, 1)) // sublane * sublane)
    # Cap so the 1-D "parallel" grid has >= min_grid steps whenever `rows`
    # allows (both v7x TensorCores stream + double-buffer overlap), without
    # shrinking below the dtype's native sublane tile.
    target = max(sublane, _round_up(pl.cdiv(rows, min_grid), sublane))
    br = min(br, target)
    return rows if br >= rows else br


def _as_2d(x, lanes):
    """Copy-less (row-major) 2D view used by the kernel."""
    total = math.prod(x.shape) if x.shape else 1
    if total % lanes == 0:
        return x.reshape(total // lanes, lanes)     # lane-dense slab
    cols = x.shape[-1] if x.ndim >= 1 else 1
    return x.reshape(total // cols, cols)           # [N, C] directly


def _am_dense_kernel(out_ref, tgt_ref, pred_ref, *, margin, scale):
    # Pure VPU elementwise; compute in f32, cast at the store (op is mem-bound).
    o = out_ref[...].astype(jnp.float32)
    t = tgt_ref[...].astype(jnp.float32)
    pred_ref[...] = (scale * (o - margin * t)).astype(pred_ref.dtype)


def angular_margin(outputs, targets, *, margin=0.0, scale=1.0,
                   lanes=_LANES, tile_bytes=_TILE_BYTES):
    """scale * (outputs - margin * targets); matches AngularMargin.forward."""
    assert outputs.shape == targets.shape, "outputs/targets must match"
    assert outputs.dtype == targets.dtype, "outputs/targets dtype must match"

    orig_shape = outputs.shape
    dtype = outputs.dtype
    total = math.prod(orig_shape) if orig_shape else 1
    if total == 0:
        return jnp.zeros(orig_shape, dtype)

    itemsize = jnp.dtype(dtype).itemsize
    sublane = _sublane_min(dtype)

    o2 = _as_2d(outputs, lanes)
    t2 = _as_2d(targets, lanes)
    rows, cols = o2.shape
    row_bytes = cols * itemsize

    # Pathological last dim: a single sublane-height block would blow VMEM
    # (3 operands x 2 buffers). Plain XLA elementwise is already at the HBM
    # roofline for such shapes.
    if sublane * row_bytes * 6 > _VMEM_LIMIT:
        return (scale * (outputs.astype(jnp.float32)
                         - margin * targets.astype(jnp.float32))).astype(dtype)

    block_rows = _pick_block_rows(rows, row_bytes, sublane, tile_bytes)
    grid = (pl.cdiv(rows, block_rows),)

    kernel = functools.partial(_am_dense_kernel,
                               margin=float(margin), scale=float(scale))
    pred2 = pl.pallas_call(
        kernel,
        out_shape=jax.ShapeDtypeStruct((rows, cols), dtype),
        grid=grid,
        in_specs=[
            pl.BlockSpec((block_rows, cols), lambda i: (i, 0)),
            pl.BlockSpec((block_rows, cols), lambda i: (i, 0)),
        ],
        out_specs=pl.BlockSpec((block_rows, cols), lambda i: (i, 0)),
        compiler_params=pltpu.CompilerParams(
            dimension_semantics=("parallel",),
            vmem_limit_bytes=_VMEM_LIMIT,
        ),
        cost_estimate=pl.CostEstimate(
            flops=3 * rows * cols,
            transcendentals=0,
            bytes_accessed=3 * rows * cols * itemsize,
        ),
    )(o2, t2)

    return pred2.reshape(orig_shape)


def _am_label_kernel(lbl_ref, out_ref, pred_ref, *, margin, scale):
    o = out_ref[...].astype(jnp.float32)
    r, c = o.shape
    col_ids = jax.lax.broadcasted_iota(jnp.int32, (r, c), 1)
    onehot = col_ids == lbl_ref[...]                 # lbl block is (r, 1) int32
    pred_ref[...] = (scale * (o - jnp.where(onehot, jnp.float32(margin), 0.0))
                     ).astype(pred_ref.dtype)


def angular_margin_from_labels(outputs, labels, *, margin=0.0, scale=1.0,
                               tile_bytes=_TILE_BYTES):
    """Same math as angular_margin, but the one-hot targets are built in-kernel
    from integer class labels, cutting HBM traffic from 3*N*C to 2*N*C elems."""
    orig_shape = outputs.shape
    dtype = outputs.dtype
    assert outputs.ndim >= 2, "expects [..., C] outputs"
    assert labels.shape == orig_shape[:-1], "labels must match leading dims"
    cols = orig_shape[-1]
    rows = math.prod(orig_shape[:-1])
    if rows * cols == 0:
        return jnp.zeros(orig_shape, dtype)

    itemsize = jnp.dtype(dtype).itemsize
    sublane = _sublane_min(dtype)
    row_bytes = cols * itemsize
    if sublane * row_bytes * 4 > _VMEM_LIMIT:
        onehot = jax.nn.one_hot(labels, cols, dtype=jnp.float32)
        return (scale * (outputs.astype(jnp.float32) - margin * onehot)).astype(dtype)

    o2 = outputs.reshape(rows, cols)
    l2 = labels.reshape(rows, 1).astype(jnp.int32)
    block_rows = _pick_block_rows(rows, row_bytes, sublane, tile_bytes)
    grid = (pl.cdiv(rows, block_rows),)

    kernel = functools.partial(_am_label_kernel,
                               margin=float(margin), scale=float(scale))
    pred2 = pl.pallas_call(
        kernel,
        out_shape=jax.ShapeDtypeStruct((rows, cols), dtype),
        grid=grid,
        in_specs=[
            pl.BlockSpec((block_rows, 1), lambda i: (i, 0)),
            pl.BlockSpec((block_rows, cols), lambda i: (i, 0)),
        ],
        out_specs=pl.BlockSpec((block_rows, cols), lambda i: (i, 0)),
        compiler_params=pltpu.CompilerParams(
            dimension_semantics=("parallel",),
            vmem_limit_bytes=_VMEM_LIMIT,
        ),
        cost_estimate=pl.CostEstimate(
            flops=3 * rows * cols,
            transcendentals=0,
            bytes_accessed=2 * rows * cols * itemsize + rows * 4,
        ),
    )(l2, o2)

    return pred2.reshape(orig_shape)


if __name__ == "__main__":
    # AngularMargin has no learned parameters; margin/scale are hyperparams.
    margin = 0.2
    scale = 30.0

    key = jax.random.PRNGKey(0)
    k0, k1, k2, k3, k4 = jax.random.split(key, 5)

    # 1) Small [N, C] example matching the module's contract.
    N, C = 8, 16
    outputs = jax.random.uniform(k0, (N, C), jnp.float32, -1.0, 1.0)
    labels = jax.random.randint(k1, (N,), 0, C)
    targets = jax.nn.one_hot(labels, C, dtype=jnp.float32)
    pred = jax.block_until_ready(
        angular_margin(outputs, targets, margin=margin, scale=scale))
    ref = scale * (outputs - margin * targets)
    assert pred.shape == (N, C)
    assert jnp.allclose(pred, ref, atol=1e-6, rtol=1e-6)

    # 2) Docstring example semantics (margin=0, scale=1).
    ex_out = jnp.array([[1., -1.], [-1., 1.], [0.9, 0.1], [0.1, 0.9]], jnp.float32)
    ex_tgt = jnp.array([[1., 0.], [0., 1.], [1., 0.], [0., 1.]], jnp.float32)
    ex_pred = jax.block_until_ready(angular_margin(ex_out, ex_tgt))
    assert bool(jnp.all((ex_pred[:, 0] > ex_pred[:, 1])
                        == jnp.array([True, False, True, False])))

    # 3) Lane-dense fast path (total % 512 == 0), >= 4 parallel grid steps.
    N3, C3 = 64, 512
    o3 = jax.random.uniform(k2, (N3, C3), jnp.float32, -1.0, 1.0)
    t3 = jax.nn.one_hot(jax.random.randint(k2, (N3,), 0, C3), C3, dtype=jnp.float32)
    p3 = jax.block_until_ready(angular_margin(o3, t3, margin=margin, scale=scale))
    assert jnp.allclose(p3, scale * (o3 - margin * t3), atol=1e-5, rtol=1e-5)

    # 4) Ragged shape tiled directly as [N, C]: no pad/slice, partial last row
    #    block (13 % 8 != 0) and lane tail (515 % 128 != 0) masked by Pallas.
    N4, C4 = 13, 515
    o4 = jax.random.uniform(k3, (N4, C4), jnp.float32, -1.0, 1.0)
    t4 = jax.nn.one_hot(jax.random.randint(k3, (N4,), 0, C4), C4, dtype=jnp.float32)
    p4 = jax.block_until_ready(angular_margin(o4, t4, margin=margin, scale=scale))
    assert jnp.allclose(p4, scale * (o4 - margin * t4), atol=1e-5, rtol=1e-5)

    # 5) bf16 inputs (dtype-aware sublane rounding).
    o5 = jax.random.uniform(k4, (48, 96), jnp.float32, -1.0, 1.0).astype(jnp.bfloat16)
    t5 = jax.nn.one_hot(jax.random.randint(k4, (48,), 0, 96), 96).astype(jnp.bfloat16)
    p5 = jax.block_until_ready(angular_margin(o5, t5, margin=margin, scale=scale))
    ref5 = (scale * (o5.astype(jnp.float32) - margin * t5.astype(jnp.float32))
            ).astype(jnp.bfloat16)
    assert jnp.allclose(p5.astype(jnp.float32), ref5.astype(jnp.float32),
                        atol=0.25, rtol=2e-2)

    # 6) Label-based variant: one-hot built in-kernel, only 2 streamed tensors.
    N6, C6 = 37, 300
    o6 = jax.random.uniform(k1, (N6, C6), jnp.float32, -1.0, 1.0)
    l6 = jax.random.randint(k2, (N6,), 0, C6)
    p6 = jax.block_until_ready(
        angular_margin_from_labels(o6, l6, margin=margin, scale=scale))
    ref6 = scale * (o6 - margin * jax.nn.one_hot(l6, C6, dtype=jnp.float32))
    assert jnp.allclose(p6, ref6, atol=1e-5, rtol=1e-5)

    print("KERNEL_OK")
</pallas_src>

<mosaic_0001>
module attributes {stable_mosaic.version = 11 : i64} {
  func.func @_am_dense_kernel(%arg0: i32, %arg1: memref<8x16xf32, #tpu.memory_space<vmem>>, %arg2: memref<8x16xf32, #tpu.memory_space<vmem>>, %arg3: memref<8x16xf32, #tpu.memory_space<vmem>>) attributes {dimension_semantics = [#tpu.dimension_semantics<parallel>], iteration_bounds = array<i64: 1>, scalar_prefetch = 0 : i64, scratch_operands = 0 : i64, tpu.core_type = #tpu.core_type<tc>, window_params = [{transform_indices = @transform_0, window_bounds = array<i64: 8, 16>}, {transform_indices = @transform_1, window_bounds = array<i64: 8, 16>}, {transform_indices = @transform_2, window_bounds = array<i64: 8, 16>}]} {
    %c0 = arith.constant 0 : index
    %c0_0 = arith.constant 0 : index
    %0 = vector.load %arg1[%c0, %c0_0] : memref<8x16xf32, #tpu.memory_space<vmem>>, vector<8x16xf32>
    %c0_1 = arith.constant 0 : index
    %c0_2 = arith.constant 0 : index
    %1 = vector.load %arg2[%c0_1, %c0_2] : memref<8x16xf32, #tpu.memory_space<vmem>>, vector<8x16xf32>
    %cst = arith.constant 2.000000e-01 : f32
    %2 = vector.broadcast %cst : f32 to vector<8x16xf32>
    %3 = arith.mulf %2, %1 : vector<8x16xf32>
    %4 = arith.subf %0, %3 : vector<8x16xf32>
    %cst_3 = arith.constant 3.000000e+01 : f32
    %5 = vector.broadcast %cst_3 : f32 to vector<8x16xf32>
    %6 = arith.mulf %5, %4 : vector<8x16xf32>
    %c0_4 = arith.constant 0 : index
    %c0_5 = arith.constant 0 : index
    %7 = vector.load %arg3[%c0_4, %c0_5] : memref<8x16xf32, #tpu.memory_space<vmem>>, vector<8x16xf32>
    tpu.vector_store %arg3[%c0_4, %c0_5], %6 {strides = array<i32>} : memref<8x16xf32, #tpu.memory_space<vmem>>, vector<8x16xf32>,
    return
  }
  func.func @transform_0(%arg0: i32) -> (i32, i32) {
    %c0_i32 = arith.constant 0 : i32
    %c0_i32_0 = arith.constant 0 : i32
    return %arg0, %c0_i32 : i32, i32
  }
  func.func @transform_1(%arg0: i32) -> (i32, i32) {
    %c0_i32 = arith.constant 0 : i32
    %c0_i32_0 = arith.constant 0 : i32
    return %arg0, %c0_i32 : i32, i32
  }
  func.func @transform_2(%arg0: i32) -> (i32, i32) {
    %c0_i32 = arith.constant 0 : i32
    %c0_i32_0 = arith.constant 0 : i32
    return %arg0, %c0_i32 : i32, i32
  }
}

</mosaic_0001>

<llo_original>
// kernel: tpu_custom_call.1
$region0: #{tpu_custom_call.1}
  #allocation0 [shape = 'u32[]', space=smem, size = 0x4, offset = 0x4, fixed_abs, tag = 'smem constant byte address 0x4 - core index']
  #allocation1 [shape = 'u32[144,128]{1,0:T(1,128)}', space=vmem, size = 0x12000, scoped, tag = 'internal scratch']
  %s0 = inlined_call_operand.hbm [shape: f32[8,16], index: 0, kind: input, shape index: {}]
  %s1 = inlined_call_operand.hbm [shape: f32[8,16], index: 1, kind: input, shape index: {}]
  %s2 = inlined_call_operand.hbm [shape: f32[8,16], index: 2, kind: output, shape index: {}]
  %s3 = sld [smem:[#allocation0]]
  $region26: #{tpu_custom_call.1} parent=0
    _
  %s5 = ssub.s32 1, %s3
  %s6 = scalar_select 0, %s5, %s3
  $region1: #{tpu_custom_call.1} parent=0
    #allocation2 [shape = 'u8[4096]{0}', space=vmem, size = 0x1000, scoped, tag = 'input window, operand 0, single buffered']
    #allocation3 [shape = 's32[1]{0}', space=sflag, size = 0x4, scoped, tag = 'scoped memory for tpu_custom_call.1']
    #allocation4 [shape = 's32[1]{0}', space=sflag, size = 0x4, scoped, tag = 'scoped memory for tpu_custom_call.1']
    #allocation5 [shape = 'u8[4096]{0}', space=vmem, size = 0x1000, scoped, tag = 'input window, operand 1, single buffered']
    #allocation6 [shape = 's32[1]{0}', space=sflag, size = 0x4, scoped, tag = 'scoped memory for tpu_custom_call.1']
    #allocation7 [shape = 'u8[4096]{0}', space=vmem, size = 0x1000, scoped, tag = 'output window, operand 0, single buffered']
    %7 = vsyncpa [#allocation3], 0
    %8 = vsyncpa [#allocation6], 0
    %9 = vsyncpa [#allocation4], 0
    // Predicated region
    $region2: #{tpu_custom_call.1} parent=1 // pred_check
      _
    $region3: #{tpu_custom_call.1} parent=1 // pred_check_branch
      %11 = sbr.rel (0) target = $region5
    $region4: #{tpu_custom_call.1} parent=1 // pred_region
      %s13 = ssub.s32 128, 128
      %14 = vsyncadd [#allocation3], %s13
      %s16 = sshll.u32 [#allocation2], 4
      %s17 = int_to_ptr.vmem [resolvable:$true] %s16
      %19 = dma.hbm_to_vmem [thread:$0]  %s0, 128, %s17, [#allocation3]
    $region5: #{tpu_custom_call.1} parent=1 // pred_fallthru
      _
    // Predicated region
    $region6: #{tpu_custom_call.1} parent=1 // pred_check
      _
    $region7: #{tpu_custom_call.1} parent=1 // pred_check_branch
      %21 = sbr.rel (0) target = $region9
    $region8: #{tpu_custom_call.1} parent=1 // pred_region
      %s23 = ssub.s32 128, 128
      %24 = vsyncadd [#allocation6], %s23
      %s26 = sshll.u32 [#allocation5], 4
      %s27 = int_to_ptr.vmem [resolvable:$true] %s26
      %29 = dma.hbm_to_vmem [thread:$0]  %s1, 128, %s27, [#allocation6]
    $region9: #{tpu_custom_call.1} parent=1 // pred_fallthru
      _
    // Predicated region
    $region10: #{tpu_custom_call.1} parent=1 // pred_check
      _
    $region11: #{tpu_custom_call.1} parent=1 // pred_check_branch
      %31 = sbr.rel (0) target = $region13
    $region12: #{tpu_custom_call.1} parent=1 // pred_region
      %32 = dma.done [#allocation3], 128
    $region13: #{tpu_custom_call.1} parent=1 // pred_fallthru
      _
    // Predicated region
    $region14: #{tpu_custom_call.1} parent=1 // pred_check
      _
    $region15: #{tpu_custom_call.1} parent=1 // pred_check_branch
      %34 = sbr.rel (0) target = $region17
    $region16: #{tpu_custom_call.1} parent=1 // pred_region
      %35 = dma.done [#allocation6], 128
    $region17: #{tpu_custom_call.1} parent=1 // pred_fallthru
      _
    %v36 = vld [vmem:[#allocation2] sm:$0xff]
    %v37 = vld [vmem:[#allocation5] sm:$0xff]
    %v38 = vmul.f32 %v37, 0.2
    %v39 = vsub.f32 %v36, %v38
    %v40 = vmul.f32 %v39, 30.0
    %vm41 = vcmask 130048
    %42 = vst.msk [vmem:[#allocation7] sm:$0xff] %vm41, %v40
    // Predicated region
    $region18: #{tpu_custom_call.1} parent=1 // pred_check
      _
    $region19: #{tpu_custom_call.1} parent=1 // pred_check_branch
      %44 = sbr.rel (0) target = $region21
    $region20: #{tpu_custom_call.1} parent=1 // pred_region
      %s46 = ssub.s32 128, 128
      %47 = vsyncadd [#allocation4], %s46
      %s49 = sshll.u32 [#allocation7], 4
      %s50 = int_to_ptr.vmem [resolvable:$true] %s49
      %52 = dma.vmem_to_hbm [thread:$0]  %s50, 128, %s2, [#allocation4]
    $region21: #{tpu_custom_call.1} parent=1 // pred_fallthru
      _
    // Predicated region
    $region22: #{tpu_custom_call.1} parent=1 // pred_check
      _
    $region23: #{tpu_custom_call.1} parent=1 // pred_check_branch
      %54 = sbr.rel (0) target = $region25
    $region24: #{tpu_custom_call.1} parent=1 // pred_region
      %55 = dma.done [#allocation4], 128
    $region25: #{tpu_custom_call.1} parent=1 // pred_fallthru
      _
    %56 = vsyncpa [#allocation3], 1
    %57 = vsyncpa [#allocation6], 1
    %58 = vsyncpa [#allocation4], 1

</llo_original>
